<compile_context>
chip_gen: v7x
topology: tpu7x:2x2x1
jax: 0.10.0
libtpu: 0.0.40
codegen_flags: <defaults>
</compile_context>

<pallas_src>
import functools

import jax
import jax.numpy as jnp
from jax.experimental import pallas as pl
from jax.experimental.pallas import tpu as pltpu


HIDDEN = 256            # per-head hidden width (fixed by the PyTorch module)
_SUBLANE = 8            # f32 sublane tile
_MAX_BATCH_TILE = 512   # batch tile cap for large (training-size) batches


def _round_up(x, m):
    return ((x + m - 1) // m) * m


def _slab_layout(state_dim, action_dim, hidden=HIDDEN):
    """Row offsets inside the packed bf16 weight+bias slab (cols = 2*hidden)."""
    d_pad = _round_up(state_dim + action_dim, _SUBLANE)
    r_w1 = 0                        # fused layer-1 weight [w1 | w4], rows = d_pad
    r_w2 = r_w1 + d_pad             # [w2 | w5]  (hidden, 2*hidden)
    r_w3t = r_w2 + hidden           # row 0: [w3^T | w6^T]
    r_b = r_w3t + _SUBLANE          # row 0: [b1|b4], row 1: [b2|b5], row 2: [b3,b6,0..]
    rows = r_b + _SUBLANE
    return dict(d_pad=d_pad, r_w1=r_w1, r_w2=r_w2, r_w3t=r_w3t, r_b=r_b,
                rows=rows, cols=2 * hidden)


def _critic_kernel(sa_ref, w_ref, o_ref, *, hidden, lay):
    h2 = 2 * hidden
    d_pad = lay["d_pad"]

    # bf16 operands for every MXU matmul; f32 accumulation + f32 VPU epilogue.
    sa = sa_ref[...].astype(jnp.bfloat16)                       # (TB, d_pad)

    # ---- fused layer 1 (l1 & l4): relu([state|action|0pad] @ [w1|w4] + [b1|b4]) ----
    w1 = w_ref[pl.ds(lay["r_w1"], d_pad), :]                    # bf16 (d_pad, 2H)
    b1 = w_ref[pl.ds(lay["r_b"] + 0, 1), :].astype(jnp.float32)  # (1, 2H)
    h = jnp.dot(sa, w1, preferred_element_type=jnp.float32)     # (TB, 2H) f32
    h = jnp.maximum(h + b1, 0.0)

    # ---- layer 2 (l2 & l5): two half-width matmuls on 128-aligned lane slices ----
    w25 = w_ref[pl.ds(lay["r_w2"], hidden), :]                  # bf16 (H, 2H) = [w2 | w5]
    b2 = w_ref[pl.ds(lay["r_b"] + 1, 1), :].astype(jnp.float32)  # (1, 2H)
    hb = h.astype(jnp.bfloat16)
    g1 = jnp.dot(hb[:, :hidden], w25[:, :hidden],
                 preferred_element_type=jnp.float32)            # (TB, H)
    g2 = jnp.dot(hb[:, hidden:], w25[:, hidden:],
                 preferred_element_type=jnp.float32)            # (TB, H)
    g1 = jnp.maximum(g1 + b2[:, :hidden], 0.0)
    g2 = jnp.maximum(g2 + b2[:, hidden:], 0.0)

    # ---- layer 3 (l3 & l6): multiply + lane reduction (VPU/XLU epilogue) ----
    w36 = w_ref[pl.ds(lay["r_w3t"], 1), :].astype(jnp.float32)  # (1, 2H) = [w3^T | w6^T]
    b36 = w_ref[pl.ds(lay["r_b"] + 2, 1), :].astype(jnp.float32)
    q1 = jnp.sum(g1 * w36[:, :hidden], axis=1, keepdims=True) + b36[:, 0:1]
    q2 = jnp.sum(g2 * w36[:, hidden:], axis=1, keepdims=True) + b36[:, 1:2]

    # Single store of the (TB, 2) result (output is tiny; lane-padding to 128
    # would cost more HBM write traffic than the masked store saves here).
    o_ref[...] = jnp.concatenate([q1, q2], axis=1).astype(o_ref.dtype)


@jax.jit
def critic_forward(state, action, w_slab):
    """Returns (q1, q2), each (B, 1) float32 — matches Critic.forward."""
    B, state_dim = state.shape
    action_dim = action.shape[1]
    lay = _slab_layout(state_dim, action_dim, HIDDEN)
    assert w_slab.shape == (lay["rows"], lay["cols"]), "weight slab layout mismatch"
    w_slab = w_slab.astype(jnp.bfloat16)

    # Fold the concat (and pad to a sublane multiple) in the wrapper so the
    # kernel does one layer-1 matmul with a sublane-aligned weight slice.
    d = state_dim + action_dim
    sa = jnp.concatenate([state.astype(jnp.float32),
                          action.astype(jnp.float32)], axis=1)
    if lay["d_pad"] != d:
        sa = jnp.pad(sa, ((0, 0), (0, lay["d_pad"] - d)))

    # Batch tiling: single tile for tiny batches; otherwise guarantee >= 2
    # grid steps (both v7x TensorCores) with tiles up to _MAX_BATCH_TILE rows.
    if B <= 16:
        tb = max(_SUBLANE, _round_up(B, _SUBLANE))
    else:
        tb = min(_MAX_BATCH_TILE, _round_up(pl.cdiv(B, 2), _SUBLANE))
    b_pad = _round_up(B, tb)
    if b_pad != B:
        sa = jnp.pad(sa, ((0, b_pad - B), (0, 0)))

    kernel = functools.partial(_critic_kernel, hidden=HIDDEN, lay=lay)

    out = pl.pallas_call(
        kernel,
        grid=(b_pad // tb,),
        in_specs=[
            pl.BlockSpec((tb, lay["d_pad"]), lambda i: (i, 0)),
            # Whole weight slab resident in VMEM; constant index map so it is
            # fetched once and reused across all batch tiles.
            pl.BlockSpec((lay["rows"], lay["cols"]), lambda i: (0, 0)),
        ],
        out_specs=pl.BlockSpec((tb, 2), lambda i: (i, 0)),
        out_shape=jax.ShapeDtypeStruct((b_pad, 2), jnp.float32),
        compiler_params=pltpu.CompilerParams(
            dimension_semantics=("parallel",)),
    )(sa, w_slab)

    q = out[:B]
    return q[:, 0:1], q[:, 1:2]


def init_critic_params(key, state_dim, action_dim, hidden=HIDDEN):
    """Unpacked params: weights as (in, out), biases as (1, out), f32."""
    # TODO(synk): the PyTorch initQ pickle-loading path is file I/O and is not
    # reproduced here; load real weights and pass them through pack_critic_params.
    d_in = state_dim + action_dim
    dims = [(d_in, hidden), (hidden, hidden), (hidden, 1),   # Q1: l1, l2, l3
            (d_in, hidden), (hidden, hidden), (hidden, 1)]   # Q2: l4, l5, l6
    params = []
    for fan_in, fan_out in dims:
        key, kw, kb = jax.random.split(key, 3)
        bound = 1.0 / jnp.sqrt(jnp.float32(fan_in))
        w = jax.random.uniform(kw, (fan_in, fan_out), jnp.float32, -bound, bound)
        b = jax.random.uniform(kb, (1, fan_out), jnp.float32, -bound, bound)
        params.extend([w, b])
    return tuple(params)


def pack_critic_params(params, state_dim, action_dim, hidden=HIDDEN):
    """Pack the 12 weight/bias arrays into one contiguous bf16 slab."""
    (w1, b1, w2, b2, w3, b3, w4, b4, w5, b5, w6, b6) = params
    lay = _slab_layout(state_dim, action_dim, hidden)
    d = state_dim + action_dim
    h2 = 2 * hidden
    slab = jnp.zeros((lay["rows"], lay["cols"]), jnp.float32)

    # Fused layer-1 weight [w1 | w4]; padded rows (for the zero-padded sa
    # columns) stay zero so they contribute nothing.
    w14 = jnp.concatenate([w1, w4], axis=1)                       # (d, 2H)
    slab = slab.at[lay["r_w1"]:lay["r_w1"] + d, :].set(w14)

    # Layer-2 weights side by side: [w2 | w5]  (hidden, 2H).
    w25 = jnp.concatenate([w2, w5], axis=1)
    slab = slab.at[lay["r_w2"]:lay["r_w2"] + hidden, :].set(w25)

    # Final-layer weights as one row [w3^T | w6^T].
    slab = slab.at[lay["r_w3t"], 0:hidden].set(w3[:, 0])
    slab = slab.at[lay["r_w3t"], hidden:h2].set(w6[:, 0])

    # Biases.
    slab = slab.at[lay["r_b"] + 0, :].set(jnp.concatenate([b1[0], b4[0]]))
    slab = slab.at[lay["r_b"] + 1, :].set(jnp.concatenate([b2[0], b5[0]]))
    slab = slab.at[lay["r_b"] + 2, 0].set(b3[0, 0])
    slab = slab.at[lay["r_b"] + 2, 1].set(b6[0, 0])
    return slab.astype(jnp.bfloat16)


def _reference_forward(state, action, params):
    """Pure-JAX f32 reference with the original (unfused) module semantics."""
    (w1, b1, w2, b2, w3, b3, w4, b4, w5, b5, w6, b6) = params
    sa = jnp.concatenate([state, action], axis=1)
    h = jax.nn.relu(sa @ w1 + b1)
    h = jax.nn.relu(h @ w2 + b2)
    q1 = h @ w3 + b3
    g = jax.nn.relu(sa @ w4 + b4)
    g = jax.nn.relu(g @ w5 + b5)
    q2 = g @ w6 + b6
    return q1, q2


if __name__ == "__main__":
    state_dim, action_dim = 11, 3

    key = jax.random.PRNGKey(0)
    k_params, k_state, k_action, k_state2, k_action2 = jax.random.split(key, 5)

    params = init_critic_params(k_params, state_dim, action_dim)
    w_slab = pack_critic_params(params, state_dim, action_dim)

    # Tolerance covers the bf16 MXU path (and bf16-stored biases) vs. the
    # f32 XLA reference.
    TOL = dict(atol=1e-2, rtol=1e-2)

    # --- small inference-style batch (single tile, grid=(1,)) ---
    batch = 8
    state = jax.random.normal(k_state, (batch, state_dim), jnp.float32)
    action = jax.random.normal(k_action, (batch, action_dim), jnp.float32)
    q1, q2 = critic_forward(state, action, w_slab)
    q1 = jax.block_until_ready(q1)
    q2 = jax.block_until_ready(q2)
    r1, r2 = _reference_forward(state, action, params)
    assert q1.shape == (batch, 1) and q2.shape == (batch, 1)
    assert jnp.allclose(q1, r1, **TOL)
    assert jnp.allclose(q2, r2, **TOL)

    # --- non-aligned batch exercising padding + the >=2-step parallel grid ---
    batch2 = 45
    state2 = jax.random.normal(k_state2, (batch2, state_dim), jnp.float32)
    action2 = jax.random.normal(k_action2, (batch2, action_dim), jnp.float32)
    q1b, q2b = critic_forward(state2, action2, w_slab)
    q1b = jax.block_until_ready(q1b)
    q2b = jax.block_until_ready(q2b)
    r1b, r2b = _reference_forward(state2, action2, params)
    assert q1b.shape == (batch2, 1) and q2b.shape == (batch2, 1)
    assert jnp.allclose(q1b, r1b, **TOL)
    assert jnp.allclose(q2b, r2b, **TOL)

    print("KERNEL_OK")
</pallas_src>

<mosaic_0001>
module attributes {stable_mosaic.version = 11 : i64} {
  func.func @_critic_kernel(%arg0: i32, %arg1: memref<8x16xf32, #tpu.memory_space<vmem>>, %arg2: memref<288x512xbf16, #tpu.memory_space<vmem>>, %arg3: memref<8x2xf32, #tpu.memory_space<vmem>>) attributes {dimension_semantics = [#tpu.dimension_semantics<parallel>], iteration_bounds = array<i64: 1>, scalar_prefetch = 0 : i64, scratch_operands = 0 : i64, tpu.core_type = #tpu.core_type<tc>, window_params = [{transform_indices = @transform_0, window_bounds = array<i64: 8, 16>}, {pipeline_mode = #tpu.pipeline_mode<synchronous>, transform_indices = @transform_1, window_bounds = array<i64: 288, 512>}, {transform_indices = @transform_2, window_bounds = array<i64: 8, 2>}]} {
    %c0 = arith.constant 0 : index
    %c0_0 = arith.constant 0 : index
    %0 = vector.load %arg1[%c0, %c0_0] : memref<8x16xf32, #tpu.memory_space<vmem>>, vector<8x16xf32>
    %1 = arith.truncf %0 : vector<8x16xf32> to vector<8x16xbf16>
    %c0_1 = arith.constant 0 : index
    %c0_2 = arith.constant 0 : index
    %2 = vector.load %arg2[%c0_1, %c0_2] : memref<288x512xbf16, #tpu.memory_space<vmem>>, vector<16x512xbf16>
    %c280 = arith.constant 280 : index
    %c0_3 = arith.constant 0 : index
    %3 = vector.load %arg2[%c280, %c0_3] : memref<288x512xbf16, #tpu.memory_space<vmem>>, vector<1x512xbf16>
    %4 = arith.extf %3 : vector<1x512xbf16> to vector<1x512xf32>
    %cst = arith.constant dense<0.000000e+00> : vector<8x512xf32>
    %5 = tpu.matmul %1, %2, %cst {dimension_numbers = #tpu.dot_dimension_numbers<[1], [0], [0], [1], [0, 0, 1, 1], [], []>} : vector<8x16xbf16>, vector<16x512xbf16>, vector<8x512xf32> -> vector<8x512xf32>
    %6 = vector.broadcast %4 : vector<1x512xf32> to vector<8x512xf32>
    %7 = arith.addf %5, %6 : vector<8x512xf32>
    %cst_4 = arith.constant 0.000000e+00 : f32
    %8 = vector.broadcast %cst_4 : f32 to vector<8x512xf32>
    %9 = arith.maximumf %7, %8 : vector<8x512xf32>
    %c16 = arith.constant 16 : index
    %c0_5 = arith.constant 0 : index
    %10 = vector.load %arg2[%c16, %c0_5] : memref<288x512xbf16, #tpu.memory_space<vmem>>, vector<256x512xbf16>
    %c281 = arith.constant 281 : index
    %c0_6 = arith.constant 0 : index
    %11 = vector.load %arg2[%c281, %c0_6] : memref<288x512xbf16, #tpu.memory_space<vmem>>, vector<1x512xbf16>
    %12 = arith.extf %11 : vector<1x512xbf16> to vector<1x512xf32>
    %13 = arith.truncf %9 : vector<8x512xf32> to vector<8x512xbf16>
    %14 = vector.extract_strided_slice %13 {offsets = [0, 0], sizes = [8, 256], strides = [1, 1]} : vector<8x512xbf16> to vector<8x256xbf16>
    %15 = vector.extract_strided_slice %10 {offsets = [0, 0], sizes = [256, 256], strides = [1, 1]} : vector<256x512xbf16> to vector<256x256xbf16>
    %cst_7 = arith.constant dense<0.000000e+00> : vector<8x256xf32>
    %16 = tpu.matmul %14, %15, %cst_7 {dimension_numbers = #tpu.dot_dimension_numbers<[1], [0], [0], [1], [0, 0, 1, 1], [], []>} : vector<8x256xbf16>, vector<256x256xbf16>, vector<8x256xf32> -> vector<8x256xf32>
    %17 = vector.extract_strided_slice %13 {offsets = [0, 256], sizes = [8, 256], strides = [1, 1]} : vector<8x512xbf16> to vector<8x256xbf16>
    %18 = vector.extract_strided_slice %10 {offsets = [0, 256], sizes = [256, 256], strides = [1, 1]} : vector<256x512xbf16> to vector<256x256xbf16>
    %cst_8 = arith.constant dense<0.000000e+00> : vector<8x256xf32>
    %19 = tpu.matmul %17, %18, %cst_8 {dimension_numbers = #tpu.dot_dimension_numbers<[1], [0], [0], [1], [0, 0, 1, 1], [], []>} : vector<8x256xbf16>, vector<256x256xbf16>, vector<8x256xf32> -> vector<8x256xf32>
    %20 = vector.extract_strided_slice %12 {offsets = [0, 0], sizes = [1, 256], strides = [1, 1]} : vector<1x512xf32> to vector<1x256xf32>
    %21 = vector.broadcast %20 : vector<1x256xf32> to vector<8x256xf32>
    %22 = arith.addf %16, %21 : vector<8x256xf32>
    %cst_9 = arith.constant 0.000000e+00 : f32
    %23 = vector.broadcast %cst_9 : f32 to vector<8x256xf32>
    %24 = arith.maximumf %22, %23 : vector<8x256xf32>
    %25 = vector.extract_strided_slice %12 {offsets = [0, 256], sizes = [1, 256], strides = [1, 1]} : vector<1x512xf32> to vector<1x256xf32>
    %26 = vector.broadcast %25 : vector<1x256xf32> to vector<8x256xf32>
    %27 = arith.addf %19, %26 : vector<8x256xf32>
    %cst_10 = arith.constant 0.000000e+00 : f32
    %28 = vector.broadcast %cst_10 : f32 to vector<8x256xf32>
    %29 = arith.maximumf %27, %28 : vector<8x256xf32>
    %c272 = arith.constant 272 : index
    %c0_11 = arith.constant 0 : index
    %30 = vector.load %arg2[%c272, %c0_11] : memref<288x512xbf16, #tpu.memory_space<vmem>>, vector<1x512xbf16>
    %31 = arith.extf %30 : vector<1x512xbf16> to vector<1x512xf32>
    %c282 = arith.constant 282 : index
    %c0_12 = arith.constant 0 : index
    %32 = vector.load %arg2[%c282, %c0_12] : memref<288x512xbf16, #tpu.memory_space<vmem>>, vector<1x512xbf16>
    %33 = arith.extf %32 : vector<1x512xbf16> to vector<1x512xf32>
    %34 = vector.extract_strided_slice %31 {offsets = [0, 0], sizes = [1, 256], strides = [1, 1]} : vector<1x512xf32> to vector<1x256xf32>
    %35 = vector.broadcast %34 : vector<1x256xf32> to vector<8x256xf32>
    %36 = arith.mulf %24, %35 : vector<8x256xf32>
    %cst_13 = arith.constant dense<0.000000e+00> : vector<8xf32>
    %37 = vector.multi_reduction <add>, %36, %cst_13 [1] : vector<8x256xf32> to vector<8xf32>
    %38 = vector.shape_cast %37 : vector<8xf32> to vector<8x1xf32>
    %39 = vector.extract_strided_slice %33 {offsets = [0, 0], sizes = [1, 1], strides = [1, 1]} : vector<1x512xf32> to vector<1x1xf32>
    %40 = vector.broadcast %39 : vector<1x1xf32> to vector<8x1xf32>
    %41 = arith.addf %38, %40 : vector<8x1xf32>
    %42 = vector.extract_strided_slice %31 {offsets = [0, 256], sizes = [1, 256], strides = [1, 1]} : vector<1x512xf32> to vector<1x256xf32>
    %43 = vector.broadcast %42 : vector<1x256xf32> to vector<8x256xf32>
    %44 = arith.mulf %29, %43 : vector<8x256xf32>
    %cst_14 = arith.constant dense<0.000000e+00> : vector<8xf32>
    %45 = vector.multi_reduction <add>, %44, %cst_14 [1] : vector<8x256xf32> to vector<8xf32>
    %46 = vector.shape_cast %45 : vector<8xf32> to vector<8x1xf32>
    %47 = vector.extract_strided_slice %33 {offsets = [0, 1], sizes = [1, 1], strides = [1, 1]} : vector<1x512xf32> to vector<1x1xf32>
    %48 = vector.broadcast %47 : vector<1x1xf32> to vector<8x1xf32>
    %49 = arith.addf %46, %48 : vector<8x1xf32>
    %50 = tpu.concatenate %41, %49 in 1 : vector<8x1xf32>, vector<8x1xf32> -> vector<8x2xf32>
    %c0_15 = arith.constant 0 : index
    %c0_16 = arith.constant 0 : index
    %51 = vector.load %arg3[%c0_15, %c0_16] : memref<8x2xf32, #tpu.memory_space<vmem>>, vector<8x2xf32>
    tpu.vector_store %arg3[%c0_15, %c0_16], %50 {strides = array<i32>} : memref<8x2xf32, #tpu.memory_space<vmem>>, vector<8x2xf32>,
    return
  }
  func.func @transform_0(%arg0: i32) -> (i32, i32) {
    %c0_i32 = arith.constant 0 : i32
    %c0_i32_0 = arith.constant 0 : i32
    return %arg0, %c0_i32 : i32, i32
  }
  func.func @transform_1(%arg0: i32) -> (i32, i32) {
    %c0_i32 = arith.constant 0 : i32
    %c0_i32_0 = arith.constant 0 : i32
    %c0_i32_1 = arith.constant 0 : i32
    return %c0_i32, %c0_i32_0 : i32, i32
  }
  func.func @transform_2(%arg0: i32) -> (i32, i32) {
    %c0_i32 = arith.constant 0 : i32
    %c0_i32_0 = arith.constant 0 : i32
    return %arg0, %c0_i32 : i32, i32
  }
}

</mosaic_0001>

<llo_original>
// kernel: critic_forward.1
$region0: #{critic_forward.1}
  #allocation0 [shape = 'u32[]', space=smem, size = 0x4, offset = 0x4, fixed_abs, tag = 'smem constant byte address 0x4 - core index']
  #allocation1 [shape = 'u32[144,128]{1,0:T(1,128)}', space=vmem, size = 0x12000, scoped, tag = 'internal scratch']
  %s0 = inlined_call_operand.vmem [shape: f32[8,16], index: 0, kind: input, shape index: {}]
  %s1 = inlined_call_operand.hbm [shape: bf16[288,512], index: 1, kind: input, shape index: {}]
  %s2 = inlined_call_operand.vmem [shape: f32[8,2], index: 2, kind: output, shape index: {}]
  %s3 = sld [smem:[#allocation0]]
  $region22: #{critic_forward.1} parent=0
    _
  %s5 = ssub.s32 1, %s3
  %s6 = scalar_select 0, %s5, %s3
  $region1: #{critic_forward.1} parent=0
    #allocation2 [shape = 'u8[294912]{0}', space=vmem, size = 0x48000, scoped, tag = 'input window, operand 1, single buffered']
    #allocation3 [shape = 's32[1]{0}', space=sflag, size = 0x4, scoped, tag = 'scoped memory for critic_forward.1']
    %7 = vsyncpa [#allocation3], 0
    // Predicated region
    $region2: #{critic_forward.1} parent=1 // pred_check
      _
    $region3: #{critic_forward.1} parent=1 // pred_check_branch
      %9 = sbr.rel (0) target = $region5
    $region4: #{critic_forward.1} parent=1 // pred_region
      _
    $region5: #{critic_forward.1} parent=1 // pred_fallthru
      _
    // Predicated region
    $region6: #{critic_forward.1} parent=1 // pred_check
      _
    $region7: #{critic_forward.1} parent=1 // pred_check_branch
      %11 = sbr.rel (0) target = $region9
    $region8: #{critic_forward.1} parent=1 // pred_region
      %s13 = ssub.s32 9216, 9216
      %14 = vsyncadd [#allocation3], %s13
      %s15 = sshll.u32 [#allocation2], 4
      %s16 = int_to_ptr.vmem [resolvable:$true] %s15
      %21 = dma.hbm_to_vmem [thread:$0]  %s1, 9216, %s16, [#allocation3], 256, 256, 16
    $region9: #{critic_forward.1} parent=1 // pred_fallthru
      _
    // Predicated region
    $region10: #{critic_forward.1} parent=1 // pred_check
      _
    $region11: #{critic_forward.1} parent=1 // pred_check_branch
      %23 = sbr.rel (0) target = $region13
    $region12: #{critic_forward.1} parent=1 // pred_region
      %24 = dma.done [#allocation3], 9216
    $region13: #{critic_forward.1} parent=1 // pred_fallthru
      _
    %v26 = vld [vmem:[%s0] sm:$0xff]
    %v27 = vpack.c.bf16 %v26, %v26
    %v28 = vld [vmem:[#allocation2] sm:$0xff]
    %v29 = vld [vmem:[#allocation2 + $0x8] sm:$0xff]
    %v30 = vld [vmem:[#allocation2 + $0x10] sm:$0xff]
    %v31 = vld [vmem:[#allocation2 + $0x18] sm:$0xff]
    %v32 = vld [vmem:[#allocation2 + $0x230] sm:$0x11]
    %v33 = vld [vmem:[#allocation2 + $0x238] sm:$0x11]
    %v34 = vunpack.c.l.bf16 %v32
    %v35 = vunpack.c.h.bf16 %v32
    %v36 = vunpack.c.l.bf16 %v33
    %v37 = vunpack.c.h.bf16 %v33
    %v38 = vlaneseq
    %v39 = vshrl.u32 %v38, 7
    %v40 = vsub.s32 0, %v39
    %v41 = vrot.slane %v34, %v40
    %v42 = vlaneseq
    %v43 = vshrl.u32 %v42, 7
    %v44 = vsub.s32 0, %v43
    %v45 = vrot.slane %v35, %v44
    %v46 = vlaneseq
    %v47 = vshrl.u32 %v46, 7
    %v48 = vsub.s32 0, %v47
    %v49 = vrot.slane %v36, %v48
    %v50 = vlaneseq
    %v51 = vshrl.u32 %v50, 7
    %v52 = vsub.s32 0, %v51
    %v53 = vrot.slane %v37, %v52
    %v58 = vunpack.c.l.b16 %v28
    %v59 = vunpack.c.h.b16 %v28
    %v60 = vunpack.c.l.b16 %v29
    %v61 = vunpack.c.h.b16 %v29
    %v62 = vunpack.c.l.b16 %v30
    %v63 = vunpack.c.h.b16 %v30
    %v64 = vunpack.c.l.b16 %v31
    %v65 = vunpack.c.h.b16 %v31
    %v66 = vpack.c.b16 %v62, %v58
    %v67 = vpack.c.b16 %v63, %v59
    %v68 = vpack.c.b16 %v64, %v60
    %v69 = vpack.c.b16 %v65, %v61
    %vm74 = vcmask 130048
    %v76 = vsel %vm74, %v27, 0
    %78 = vmatprep.subr.bf16.mxu0 %v67
    %79 = vmatpush1.bf16.msra.mxu0 %v66
    %80 = vmatprep.subr.bf16.mxu0 0
    %81 = vmatpush1.bf16.msra.mxu0 0
    %82 = vmatprep.subr.bf16.mxu0 0
    %83 = vmatpush1.bf16.msra.mxu0 0
    %84 = vmatprep.subr.bf16.mxu0 0
    %85 = vmatpush1.bf16.msra.mxu0 0
    %86 = vmatprep.subr.bf16.mxu0 0
    %87 = vmatpush1.bf16.msra.mxu0 0
    %88 = vmatprep.subr.bf16.mxu0 0
    %89 = vmatpush1.bf16.msra.mxu0 0
    %90 = vmatprep.subr.bf16.mxu0 0
    %91 = vmatpush1.bf16.msra.mxu0 0
    %92 = vmatprep.subr.bf16.mxu0 0
    %93 = vmatpush1.bf16.msra.mxu0 0
    %94 = vmatprep.subr.bf16.mxu0 0
    %95 = vmatpush1.bf16.msra.mxu0 0
    %96 = vmatprep.subr.bf16.mxu0 0
    %97 = vmatpush1.bf16.msra.mxu0 0
    %98 = vmatprep.subr.bf16.mxu0 0
    %99 = vmatpush1.bf16.msra.mxu0 0
    %100 = vmatprep.subr.bf16.mxu0 0
    %101 = vmatpush1.bf16.msra.mxu0 0
    %102 = vmatprep.subr.bf16.mxu0 0
    %103 = vmatpush1.bf16.msra.mxu0 0
    %104 = vmatprep.subr.bf16.mxu0 0
    %105 = vmatpush1.bf16.msra.mxu0 0
    %106 = vmatprep.subr.bf16.mxu0 0
    %107 = vmatpush1.bf16.msra.mxu0 0
    %108 = vmatprep.subr.bf16.mxu0 0
    %109 = vmatpush1.bf16.msra.mxu0 0
    %110 = vmatprep.mubr.bf16.mxu0 0
    %111 = vmatmul.mubr.bf16.gmra.mrb[0].mxu0 %v76
    %v112 = vpop.f32.mrb[0].mxu0
    %v113 = vadd.f32 %v41, %v112
    %v114 = vpop.f32.mrb[0].mxu0
    %v115 = vadd.f32 %v45, %v114
    %v116 = vpop.f32.mrb[0].mxu0
    %v117 = vpop.f32.mrb[0].mxu0
    %118 = vdwg.mxu0
    %119 = vmatprep.subr.bf16.mxu0 %v69
    %120 = vmatpush1.bf16.msra.mxu0 %v68
    %121 = vmatprep.subr.bf16.mxu0 0
    %122 = vmatpush1.bf16.msra.mxu0 0
    %123 = vmatprep.subr.bf16.mxu0 0
    %124 = vmatpush1.bf16.msra.mxu0 0
    %125 = vmatprep.subr.bf16.mxu0 0
    %126 = vmatpush1.bf16.msra.mxu0 0
    %127 = vmatprep.subr.bf16.mxu0 0
    %128 = vmatpush1.bf16.msra.mxu0 0
    %129 = vmatprep.subr.bf16.mxu0 0
    %130 = vmatpush1.bf16.msra.mxu0 0
    %131 = vmatprep.subr.bf16.mxu0 0
    %132 = vmatpush1.bf16.msra.mxu0 0
    %133 = vmatprep.subr.bf16.mxu0 0
    %134 = vmatpush1.bf16.msra.mxu0 0
    %135 = vmatprep.subr.bf16.mxu0 0
    %136 = vmatpush1.bf16.msra.mxu0 0
    %137 = vmatprep.subr.bf16.mxu0 0
    %138 = vmatpush1.bf16.msra.mxu0 0
    %139 = vmatprep.subr.bf16.mxu0 0
    %140 = vmatpush1.bf16.msra.mxu0 0
    %141 = vmatprep.subr.bf16.mxu0 0
    %142 = vmatpush1.bf16.msra.mxu0 0
    %143 = vmatprep.subr.bf16.mxu0 0
    %144 = vmatpush1.bf16.msra.mxu0 0
    %145 = vmatprep.subr.bf16.mxu0 0
    %146 = vmatpush1.bf16.msra.mxu0 0
    %147 = vmatprep.subr.bf16.mxu0 0
    %148 = vmatpush1.bf16.msra.mxu0 0
    %149 = vmatprep.subr.bf16.mxu0 0
    %150 = vmatpush1.bf16.msra.mxu0 0
    %151 = vmatprep.mubr.bf16.mxu0 0
    %152 = vmatmul.mubr.bf16.gmra.mrb[0].mxu0 %v76
    %v153 = vpop.f32.mrb[0].mxu0
    %v154 = vadd.f32 %v49, %v153
    %v155 = vpop.f32.mrb[0].mxu0
    %v156 = vadd.f32 %v53, %v155
    %v157 = vpop.f32.mrb[0].mxu0
    %v158 = vpop.f32.mrb[0].mxu0
    %159 = vdwg.mxu0
    %v160 = vmax.f32 %v113, 0.0
    %v161 = vmax.f32 %v115, 0.0
    %v162 = vmax.f32 %v154, 0.0
    %v163 = vmax.f32 %v156, 0.0
    %v164 = vld [vmem:[#allocation2 + $0x20] sm:$0xff]
    %v165 = vld [vmem:[#allocation2 + $0x28] sm:$0xff]
    %v166 = vld [vmem:[#allocation2 + $0x30] sm:$0xff]
    %v167 = vld [vmem:[#allocation2 + $0x38] sm:$0xff]
    %v168 = vld [vmem:[#allocation2 + $0x40] sm:$0xff]
    %v169 = vld [vmem:[#allocation2 + $0x48] sm:$0xff]
    %v170 = vld [vmem:[#allocation2 + $0x50] sm:$0xff]
    %v171 = vld [vmem:[#allocation2 + $0x58] sm:$0xff]
    %v172 = vld [vmem:[#allocation2 + $0x60] sm:$0xff]
    %v173 = vld [vmem:[#allocation2 + $0x68] sm:$0xff]
    %v174 = vld [vmem:[#allocation2 + $0x70] sm:$0xff]
    %v175 = vld [vmem:[#allocation2 + $0x78] sm:$0xff]
    %v176 = vld [vmem:[#allocation2 + $0x80] sm:$0xff]
    %v177 = vld [vmem:[#allocation2 + $0x88] sm:$0xff]
    %v178 = vld [vmem:[#allocation2 + $0x90] sm:$0xff]
    %v179 = vld [vmem:[#allocation2 + $0x98] sm:$0xff]
    %v180 = vld [vmem:[#allocation2 + $0xa0] sm:$0xff]
    %v181 = vld [vmem:[#allocation2 + $0xa8] sm:$0xff]
    %v182 = vld [vmem:[#allocation2 + $0xb0] sm:$0xff]
    %v183 = vld [vmem:[#allocation2 + $0xb8] sm:$0xff]
    %v184 = vld [vmem:[#allocation2 + $0xc0] sm:$0xff]
    %v185 = vld [vmem:[#allocation2 + $0xc8] sm:$0xff]
    %v186 = vld [vmem:[#allocation2 + $0xd0] sm:$0xff]
    %v187 = vld [vmem:[#allocation2 + $0xd8] sm:$0xff]
    %v188 = vld [vmem:[#allocation2 + $0xe0] sm:$0xff]
    %v189 = vld [vmem:[#allocation2 + $0xe8] sm:$0xff]
    %v190 = vld [vmem:[#allocation2 + $0xf0] sm:$0xff]
    %v191 = vld [vmem:[#allocation2 + $0xf8] sm:$0xff]
    %v192 = vld [vmem:[#allocation2 + $0x100] sm:$0xff]
    %v193 = vld [vmem:[#allocation2 + $0x108] sm:$0xff]
    %v194 = vld [vmem:[#allocation2 + $0x110] sm:$0xff]
    %v195 = vld [vmem:[#allocation2 + $0x118] sm:$0xff]
    %v196 = vld [vmem:[#allocation2 + $0x120] sm:$0xff]
    %v197 = vld [vmem:[#allocation2 + $0x128] sm:$0xff]
    %v198 = vld [vmem:[#allocation2 + $0x130] sm:$0xff]
    %v199 = vld [vmem:[#allocation2 + $0x138] sm:$0xff]
    %v200 = vld [vmem:[#allocation2 + $0x140] sm:$0xff]
    %v201 = vld [vmem:[#allocation2 + $0x148] sm:$0xff]
    %v202 = vld [vmem:[#allocation2 + $0x150] sm:$0xff]
    %v203 = vld [vmem:[#allocation2 + $0x158] sm:$0xff]
    %v204 = vld [vmem:[#allocation2 + $0x160] sm:$0xff]
    %v205 = vld [vmem:[#allocation2 + $0x168] sm:$0xff]
    %v206 = vld [vmem:[#allocation2 + $0x170] sm:$0xff]
    %v207 = vld [vmem:[#allocation2 + $0x178] sm:$0xff]
    %v208 = vld [vmem:[#allocation2 + $0x180] sm:$0xff]
    %v209 = vld [vmem:[#allocation2 + $0x188] sm:$0xff]
    %v210 = vld [vmem:[#allocation2 + $0x190] sm:$0xff]
    %v211 = vld [vmem:[#allocation2 + $0x198] sm:$0xff]
    %v212 = vld [vmem:[#allocation2 + $0x1a0] sm:$0xff]
    %v213 = vld [vmem:[#allocation2 + $0x1a8] sm:$0xff]
    %v214 = vld [vmem:[#allocation2 + $0x1b0] sm:$0xff]
    %v215 = vld [vmem:[#allocation2 + $0x1b8] sm:$0xff]
    %v216 = vld [vmem:[#allocation2 + $0x1c0] sm:$0xff]
    %v217 = vld [vmem:[#allocation2 + $0x1c8] sm:$0xff]
    %v218 = vld [vmem:[#allocation2 + $0x1d0] sm:$0xff]
    %v219 = vld [vmem:[#allocation2 + $0x1d8] sm:$0xff]
    %v220 = vld [vmem:[#allocation2 + $0x1e0] sm:$0xff]
    %v221 = vld [vmem:[#allocation2 + $0x1e8] sm:$0xff]
    %v222 = vld [vmem:[#allocation2 + $0x1f0] sm:$0xff]
    %v223 = vld [vmem:[#allocation2 + $0x1f8] sm:$0xff]
    %v224 = vld [vmem:[#allocation2 + $0x200] sm:$0xff]
    %v225 = vld [vmem:[#allocation2 + $0x208] sm:$0xff]
    %v226 = vld [vmem:[#allocation2 + $0x210] sm:$0xff]
    %v227 = vld [vmem:[#allocation2 + $0x218] sm:$0xff]
    %v228 = vpack.c.bf16 %v160, %v160
    %v229 = vpack.c.bf16 %v161, %v161
    %v230 = vpack.c.bf16 %v162, %v162
    %v231 = vpack.c.bf16 %v163, %v163
    %v232 = vlaneseq
    %v233 = vshrl.u32 %v232, 7
    %v234 = vsub.s32 1, %v233
    %v235 = vrot.slane %v34, %v234
    %v236 = vlaneseq
    %v237 = vshrl.u32 %v236, 7
    %v238 = vsub.s32 1, %v237
    %v239 = vrot.slane %v35, %v238
    %v272 = vunpack.c.l.b16 %v164
    %v273 = vunpack.c.h.b16 %v164
    %v274 = vunpack.c.l.b16 %v166
    %v275 = vunpack.c.h.b16 %v166
    %v276 = vunpack.c.l.b16 %v168
    %v277 = vunpack.c.h.b16 %v168
    %v278 = vunpack.c.l.b16 %v170
    %v279 = vunpack.c.h.b16 %v170
    %v280 = vunpack.c.l.b16 %v172
    %v281 = vunpack.c.h.b16 %v172
    %v282 = vunpack.c.l.b16 %v174
    %v283 = vunpack.c.h.b16 %v174
    %v284 = vunpack.c.l.b16 %v176
    %v285 = vunpack.c.h.b16 %v176
    %v286 = vunpack.c.l.b16 %v178
    %v287 = vunpack.c.h.b16 %v178
    %v288 = vunpack.c.l.b16 %v180
    %v289 = vunpack.c.h.b16 %v180
    %v290 = vunpack.c.l.b16 %v182
    %v291 = vunpack.c.h.b16 %v182
    %v292 = vunpack.c.l.b16 %v184
    %v293 = vunpack.c.h.b16 %v184
    %v294 = vunpack.c.l.b16 %v186
    %v295 = vunpack.c.h.b16 %v186
    %v296 = vunpack.c.l.b16 %v188
    %v297 = vunpack.c.h.b16 %v188
    %v298 = vunpack.c.l.b16 %v190
    %v299 = vunpack.c.h.b16 %v190
    %v300 = vunpack.c.l.b16 %v192
    %v301 = vunpack.c.h.b16 %v192
    %v302 = vunpack.c.l.b16 %v194
    %v303 = vunpack.c.h.b16 %v194
    %v304 = vunpack.c.l.b16 %v196
    %v305 = vunpack.c.h.b16 %v196
    %v306 = vunpack.c.l.b16 %v198
    %v307 = vunpack.c.h.b16 %v198
    %v308 = vunpack.c.l.b16 %v200
    %v309 = vunpack.c.h.b16 %v200
    %v310 = vunpack.c.l.b16 %v202
    %v311 = vunpack.c.h.b16 %v202
    %v312 = vunpack.c.l.b16 %v204
    %v313 = vunpack.c.h.b16 %v204
    %v314 = vunpack.c.l.b16 %v206
    %v315 = vunpack.c.h.b16 %v206
    %v316 = vunpack.c.l.b16 %v208
    %v317 = vunpack.c.h.b16 %v208
    %v318 = vunpack.c.l.b16 %v210
    %v319 = vunpack.c.h.b16 %v210
    %v320 = vunpack.c.l.b16 %v212
    %v321 = vunpack.c.h.b16 %v212
    %v322 = vunpack.c.l.b16 %v214
    %v323 = vunpack.c.h.b16 %v214
    %v324 = vunpack.c.l.b16 %v216
    %v325 = vunpack.c.h.b16 %v216
    %v326 = vunpack.c.l.b16 %v218
    %v327 = vunpack.c.h.b16 %v218
    %v328 = vunpack.c.l.b16 %v220
    %v329 = vunpack.c.h.b16 %v220
    %v330 = vunpack.c.l.b16 %v222
    %v331 = vunpack.c.h.b16 %v222
    %v332 = vunpack.c.l.b16 %v224
    %v333 = vunpack.c.h.b16 %v224
    %v334 = vunpack.c.l.b16 %v226
    %v335 = vunpack.c.h.b16 %v226
    %v336 = vpack.c.b16 %v274, %v272
    %v337 = vpack.c.b16 %v275, %v273
    %v338 = vpack.c.b16 %v278, %v276
    %v339 = vpack.c.b16 %v279, %v277
    %v340 = vpack.c.b16 %v282, %v280
    %v341 = vpack.c.b16 %v283, %v281
    %v342 = vpack.c.b16 %v286, %v284
    %v343 = vpack.c.b16 %v287, %v285
    %v344 = vpack.c.b16 %v290, %v288
    %v345 = vpack.c.b16 %v291, %v289
    %v346 = vpack.c.b16 %v294, %v292
    %v347 = vpack.c.b16 %v295, %v293
    %v348 = vpack.c.b16 %v298, %v296
    %v349 = vpack.c.b16 %v299, %v297
    %v350 = vpack.c.b16 %v302, %v300
    %v351 = vpack.c.b16 %v303, %v301
    %v352 = vpack.c.b16 %v306, %v304
    %v353 = vpack.c.b16 %v307, %v305
    %v354 = vpack.c.b16 %v310, %v308
    %v355 = vpack.c.b16 %v311, %v309
    %v356 = vpack.c.b16 %v314, %v312
    %v357 = vpack.c.b16 %v315, %v313
    %v358 = vpack.c.b16 %v318, %v316
    %v359 = vpack.c.b16 %v319, %v317
    %v360 = vpack.c.b16 %v322, %v320
    %v361 = vpack.c.b16 %v323, %v321
    %v362 = vpack.c.b16 %v326, %v324
    %v363 = vpack.c.b16 %v327, %v325
    %v364 = vpack.c.b16 %v330, %v328
    %v365 = vpack.c.b16 %v331, %v329
    %v366 = vpack.c.b16 %v334, %v332
    %v367 = vpack.c.b16 %v335, %v333
    %400 = vmatprep.subr.bf16.mxu0 %v337
    %401 = vmatpush1.bf16.msra.mxu0 %v336
    %402 = vmatprep.subr.bf16.mxu0 %v339
    %403 = vmatpush1.bf16.msra.mxu0 %v338
    %404 = vmatprep.subr.bf16.mxu0 %v341
    %405 = vmatpush1.bf16.msra.mxu0 %v340
    %406 = vmatprep.subr.bf16.mxu0 %v343
    %407 = vmatpush1.bf16.msra.mxu0 %v342
    %408 = vmatprep.subr.bf16.mxu0 %v345
    %409 = vmatpush1.bf16.msra.mxu0 %v344
    %410 = vmatprep.subr.bf16.mxu0 %v347
    %411 = vmatpush1.bf16.msra.mxu0 %v346
    %412 = vmatprep.subr.bf16.mxu0 %v349
    %413 = vmatpush1.bf16.msra.mxu0 %v348
    %414 = vmatprep.subr.bf16.mxu0 %v351
    %415 = vmatpush1.bf16.msra.mxu0 %v350
    %416 = vmatprep.subr.bf16.mxu0 %v353
    %417 = vmatpush1.bf16.msra.mxu0 %v352
    %418 = vmatprep.subr.bf16.mxu0 %v355
    %419 = vmatpush1.bf16.msra.mxu0 %v354
    %420 = vmatprep.subr.bf16.mxu0 %v357
    %421 = vmatpush1.bf16.msra.mxu0 %v356
    %422 = vmatprep.subr.bf16.mxu0 %v359
    %423 = vmatpush1.bf16.msra.mxu0 %v358
    %424 = vmatprep.subr.bf16.mxu0 %v361
    %425 = vmatpush1.bf16.msra.mxu0 %v360
    %426 = vmatprep.subr.bf16.mxu0 %v363
    %427 = vmatpush1.bf16.msra.mxu0 %v362
    %428 = vmatprep.subr.bf16.mxu0 %v365
    %429 = vmatpush1.bf16.msra.mxu0 %v364
    %430 = vmatprep.subr.bf16.mxu0 %v367
    %431 = vmatpush1.bf16.msra.mxu0 %v366
    %432 = vmatprep.mubr.bf16.mxu0 %v229
    %433 = vmatmul.mubr.bf16.gmra.mrb[0].mxu0 %v228
    %v434 = vpop.f32.mrb[0].mxu0
    %v435 = vadd.f32 %v235, %v434
    %v436 = vpop.f32.mrb[0].mxu0
    %v437 = vadd.f32 %v239, %v436
    %v438 = vpop.f32.mrb[0].mxu0
    %v439 = vpop.f32.mrb[0].mxu0
    %440 = vdwg.mxu0
    %v441 = vmax.f32 %v435, 0.0
    %v442 = vmax.f32 %v437, 0.0
    %v443 = vlaneseq
    %v444 = vshrl.u32 %v443, 7
    %v445 = vsub.s32 1, %v444
    %v446 = vrot.slane %v36, %v445
    %v447 = vlaneseq
    %v448 = vshrl.u32 %v447, 7
    %v449 = vsub.s32 1, %v448
    %v450 = vrot.slane %v37, %v449
    %v483 = vunpack.c.l.b16 %v165
    %v484 = vunpack.c.h.b16 %v165
    %v485 = vunpack.c.l.b16 %v167
    %v486 = vunpack.c.h.b16 %v167
    %v487 = vunpack.c.l.b16 %v169
    %v488 = vunpack.c.h.b16 %v169
    %v489 = vunpack.c.l.b16 %v171
    %v490 = vunpack.c.h.b16 %v171
    %v491 = vunpack.c.l.b16 %v173
    %v492 = vunpack.c.h.b16 %v173
    %v493 = vunpack.c.l.b16 %v175
    %v494 = vunpack.c.h.b16 %v175
    %v495 = vunpack.c.l.b16 %v177
    %v496 = vunpack.c.h.b16 %v177
    %v497 = vunpack.c.l.b16 %v179
    %v498 = vunpack.c.h.b16 %v179
    %v499 = vunpack.c.l.b16 %v181
    %v500 = vunpack.c.h.b16 %v181
    %v501 = vunpack.c.l.b16 %v183
    %v502 = vunpack.c.h.b16 %v183
    %v503 = vunpack.c.l.b16 %v185
    %v504 = vunpack.c.h.b16 %v185
    %v505 = vunpack.c.l.b16 %v187
    %v506 = vunpack.c.h.b16 %v187
    %v507 = vunpack.c.l.b16 %v189
    %v508 = vunpack.c.h.b16 %v189
    %v509 = vunpack.c.l.b16 %v191
    %v510 = vunpack.c.h.b16 %v191
    %v511 = vunpack.c.l.b16 %v193
    %v512 = vunpack.c.h.b16 %v193
    %v513 = vunpack.c.l.b16 %v195
    %v514 = vunpack.c.h.b16 %v195
    %v515 = vunpack.c.l.b16 %v197
    %v516 = vunpack.c.h.b16 %v197
    %v517 = vunpack.c.l.b16 %v199
    %v518 = vunpack.c.h.b16 %v199
    %v519 = vunpack.c.l.b16 %v201
    %v520 = vunpack.c.h.b16 %v201
    %v521 = vunpack.c.l.b16 %v203
    %v522 = vunpack.c.h.b16 %v203
    %v523 = vunpack.c.l.b16 %v205
    %v524 = vunpack.c.h.b16 %v205
    %v525 = vunpack.c.l.b16 %v207
    %v526 = vunpack.c.h.b16 %v207
    %v527 = vunpack.c.l.b16 %v209
    %v528 = vunpack.c.h.b16 %v209
    %v529 = vunpack.c.l.b16 %v211
    %v530 = vunpack.c.h.b16 %v211
    %v531 = vunpack.c.l.b16 %v213
    %v532 = vunpack.c.h.b16 %v213
    %v533 = vunpack.c.l.b16 %v215
    %v534 = vunpack.c.h.b16 %v215
    %v535 = vunpack.c.l.b16 %v217
    %v536 = vunpack.c.h.b16 %v217
    %v537 = vunpack.c.l.b16 %v219
    %v538 = vunpack.c.h.b16 %v219
    %v539 = vunpack.c.l.b16 %v221
    %v540 = vunpack.c.h.b16 %v221
    %v541 = vunpack.c.l.b16 %v223
    %v542 = vunpack.c.h.b16 %v223
    %v543 = vunpack.c.l.b16 %v225
    %v544 = vunpack.c.h.b16 %v225
    %v545 = vunpack.c.l.b16 %v227
    %v546 = vunpack.c.h.b16 %v227
    %v547 = vpack.c.b16 %v485, %v483
    %v548 = vpack.c.b16 %v486, %v484
    %v549 = vpack.c.b16 %v489, %v487
    %v550 = vpack.c.b16 %v490, %v488
    %v551 = vpack.c.b16 %v493, %v491
    %v552 = vpack.c.b16 %v494, %v492
    %v553 = vpack.c.b16 %v497, %v495
    %v554 = vpack.c.b16 %v498, %v496
    %v555 = vpack.c.b16 %v501, %v499
    %v556 = vpack.c.b16 %v502, %v500
    %v557 = vpack.c.b16 %v505, %v503
    %v558 = vpack.c.b16 %v506, %v504
    %v559 = vpack.c.b16 %v509, %v507
    %v560 = vpack.c.b16 %v510, %v508
    %v561 = vpack.c.b16 %v513, %v511
    %v562 = vpack.c.b16 %v514, %v512
    %v563 = vpack.c.b16 %v517, %v515
    %v564 = vpack.c.b16 %v518, %v516
    %v565 = vpack.c.b16 %v521, %v519
    %v566 = vpack.c.b16 %v522, %v520
    %v567 = vpack.c.b16 %v525, %v523
    %v568 = vpack.c.b16 %v526, %v524
    %v569 = vpack.c.b16 %v529, %v527
    %v570 = vpack.c.b16 %v530, %v528
    %v571 = vpack.c.b16 %v533, %v531
    %v572 = vpack.c.b16 %v534, %v532
    %v573 = vpack.c.b16 %v537, %v535
    %v574 = vpack.c.b16 %v538, %v536
    %v575 = vpack.c.b16 %v541, %v539
    %v576 = vpack.c.b16 %v542, %v540
    %v577 = vpack.c.b16 %v545, %v543
    %v578 = vpack.c.b16 %v546, %v544
    %611 = vmatprep.subr.bf16.mxu0 %v548
    %612 = vmatpush1.bf16.msra.mxu0 %v547
    %613 = vmatprep.subr.bf16.mxu0 %v550
    %614 = vmatpush1.bf16.msra.mxu0 %v549
    %615 = vmatprep.subr.bf16.mxu0 %v552
    %616 = vmatpush1.bf16.msra.mxu0 %v551
    %617 = vmatprep.subr.bf16.mxu0 %v554
    %618 = vmatpush1.bf16.msra.mxu0 %v553
    %619 = vmatprep.subr.bf16.mxu0 %v556
    %620 = vmatpush1.bf16.msra.mxu0 %v555
    %621 = vmatprep.subr.bf16.mxu0 %v558
    %622 = vmatpush1.bf16.msra.mxu0 %v557
    %623 = vmatprep.subr.bf16.mxu0 %v560
    %624 = vmatpush1.bf16.msra.mxu0 %v559
    %625 = vmatprep.subr.bf16.mxu0 %v562
    %626 = vmatpush1.bf16.msra.mxu0 %v561
    %627 = vmatprep.subr.bf16.mxu0 %v564
    %628 = vmatpush1.bf16.msra.mxu0 %v563
    %629 = vmatprep.subr.bf16.mxu0 %v566
    %630 = vmatpush1.bf16.msra.mxu0 %v565
    %631 = vmatprep.subr.bf16.mxu0 %v568
    %632 = vmatpush1.bf16.msra.mxu0 %v567
    %633 = vmatprep.subr.bf16.mxu0 %v570
    %634 = vmatpush1.bf16.msra.mxu0 %v569
    %635 = vmatprep.subr.bf16.mxu0 %v572
    %636 = vmatpush1.bf16.msra.mxu0 %v571
    %637 = vmatprep.subr.bf16.mxu0 %v574
    %638 = vmatpush1.bf16.msra.mxu0 %v573
    %639 = vmatprep.subr.bf16.mxu0 %v576
    %640 = vmatpush1.bf16.msra.mxu0 %v575
    %641 = vmatprep.subr.bf16.mxu0 %v578
    %642 = vmatpush1.bf16.msra.mxu0 %v577
    %643 = vmatprep.mubr.bf16.mxu0 %v231
    %644 = vmatmul.mubr.bf16.gmra.mrb[0].mxu0 %v230
    %v645 = vpop.f32.mrb[0].mxu0
    %v646 = vadd.f32 %v446, %v645
    %v647 = vpop.f32.mrb[0].mxu0
    %v648 = vadd.f32 %v450, %v647
    %v649 = vpop.f32.mrb[0].mxu0
    %v650 = vpop.f32.mrb[0].mxu0
    %651 = vdwg.mxu0
    %v652 = vmax.f32 %v646, 0.0
    %v653 = vmax.f32 %v648, 0.0
    %v654 = vld [vmem:[#allocation2 + $0x220] sm:$0x11]
    %v655 = vld [vmem:[#allocation2 + $0x228] sm:$0x11]
    %v656 = vunpack.c.l.bf16 %v654
    %v657 = vunpack.c.h.bf16 %v654
    %v658 = vunpack.c.l.bf16 %v655
    %v659 = vunpack.c.h.bf16 %v655
    %v660 = vld [vmem:[#allocation2 + $0x230] sm:$0x22]
    %v661 = vunpack.c.l.bf16 %v660
    %v662 = vlaneseq
    %v663 = vshrl.u32 %v662, 7
    %v664 = vsub.s32 0, %v663
    %v665 = vrot.slane %v656, %v664
    %v666 = vlaneseq
    %v667 = vshrl.u32 %v666, 7
    %v668 = vsub.s32 0, %v667
    %v669 = vrot.slane %v657, %v668
    %v670 = vmul.f32 %v441, %v665
    %v671 = vmul.f32 %v442, %v669
    %v672 = vadd.f32 %v670, %v671
    %673 = vadd.xlane.f32.xlu0 %v672
    %v674 = vpop.xlane.xlu0 %673
    %v675 = vlaneseq
    %v676 = vshrl.u32 %v675, 7
    %v677 = vsub.s32 2, %v676
    %v678 = vrot.slane %v661, %v677
    %v679 = vadd.f32 %v674, %v678
    %v680 = vlaneseq
    %v681 = vshrl.u32 %v680, 7
    %v682 = vsub.s32 0, %v681
    %v683 = vrot.slane %v658, %v682
    %v684 = vlaneseq
    %v685 = vshrl.u32 %v684, 7
    %v686 = vsub.s32 0, %v685
    %v687 = vrot.slane %v659, %v686
    %v688 = vmul.f32 %v652, %v683
    %v689 = vmul.f32 %v653, %v687
    %v690 = vadd.f32 %v688, %v689
    %691 = vadd.xlane.f32.xlu0 %v690
    %v692 = vpop.xlane.xlu0 %691
    %v693 = vadd.f32 %v692, %v678
    %vm694 = vcmask 7168
    %v695 = vsel %vm694, %v679, %v693
    %vm696 = vcmask 15360
    %697 = vst.msk [vmem:[%s2] sm:$0xff] %vm696, %v695
    // Predicated region
    $region14: #{critic_forward.1} parent=1 // pred_check
      _
    $region15: #{critic_forward.1} parent=1 // pred_check_branch
      %699 = sbr.rel (0) target = $region17
    $region16: #{critic_forward.1} parent=1 // pred_region
      _
    $region17: #{critic_forward.1} parent=1 // pred_fallthru
      _
    // Predicated region
    $region18: #{critic_forward.1} parent=1 // pred_check
      _
    $region19: #{critic_forward.1} parent=1 // pred_check_branch
      %701 = sbr.rel (0) target = $region21
    $region20: #{critic_forward.1} parent=1 // pred_region
      _
    $region21: #{critic_forward.1} parent=1 // pred_fallthru
      _
    %702 = vsyncpa [#allocation3], 1

</llo_original>
